<compile_context>
chip_gen: v5e
topology: v5e:2x2
jax: 0.10.0
libtpu: 0.0.40
codegen_flags: <defaults>
</compile_context>

<pallas_src>
import functools

import jax
import jax.numpy as jnp
from jax import lax
from jax.experimental import pallas as pl
from jax.experimental.pallas import tpu as pltpu  # noqa: F401  (TPU backend assumed)

LANE = 128
_BN_EPS = 1e-5


# ----------------------------------------------------------------------------
# Small helpers
# ----------------------------------------------------------------------------
def _round_up(n, m=LANE):
    return ((n + m - 1) // m) * m


def _pad_to(x, target, axis):
    pad = target - x.shape[axis]
    if pad <= 0:
        return x
    widths = [(0, 0)] * x.ndim
    widths[axis] = (0, pad)
    return jnp.pad(x, widths)


def _full_spec(shape):
    nd = len(shape)
    return pl.BlockSpec(shape, lambda *_: (0,) * nd)


# ----------------------------------------------------------------------------
# Fused Pallas kernel: jt_specs MLP -> (concat) -> last_mlp -> log_softmax
# ----------------------------------------------------------------------------
def _fused_forward_kernel(num_layers, num_classes, *refs):
    it = iter(refs)
    pooled_ref = next(it)                                # (B, TP)
    specs_ref = next(it)                                 # (B, 128) cols 0,1 used
    jt_w0_ref = next(it)                                 # (2, HP)
    jt_wh_refs = [next(it) for _ in range(num_layers - 1)]   # (HP, HP) each
    lw0_text_ref = next(it)                              # (TP, HP)
    lw0_spec_ref = next(it)                              # (HP, HP)
    last_wh_refs = [next(it) for _ in range(num_layers - 1)]  # (HP, HP) each
    fw_ref = next(it)                                    # (HP, CP)
    vec_ref = next(it)                                   # packed b/gamma/beta (+final b)
    o_ref = next(it)                                     # (B, CP)

    hp = jt_w0_ref.shape[1]
    cp = fw_ref.shape[1]
    vec = vec_ref[...]                                   # (V, max(HP, CP)) f32

    def bn_relu(h, base):
        # Linear-bias + BatchNorm1d(train-mode batch stats) + ReLU folded into
        # one per-feature scale/shift FMA (rsqrt stays on the EUP slot).
        b = vec[base + 0][None, :hp]
        gamma = vec[base + 1][None, :hp]
        beta = vec[base + 2][None, :hp]
        h = h + b
        mean = jnp.mean(h, axis=0, keepdims=True)
        var = jnp.mean(h * h, axis=0, keepdims=True) - mean * mean
        scale = gamma * lax.rsqrt(var + _BN_EPS)
        shift = beta - mean * scale
        return jnp.maximum(h * scale + shift, 0.0)

    # --- jt_specs MLP --------------------------------------------------------
    # First layer has K=2: do it as two VPU broadcast FMAs instead of the MXU.
    specs = specs_ref[...]
    w01 = jt_w0_ref[...]
    h = specs[:, 0:1] * w01[0:1, :] + specs[:, 1:2] * w01[1:2, :]
    row = 0
    h = bn_relu(h, row)
    row += 3
    for w_ref in jt_wh_refs:
        h = jnp.dot(h, w_ref[...], preferred_element_type=jnp.float32)
        h = bn_relu(h, row)
        row += 3

    # --- last_mlp: torch.cat((pooled, x_spects), 1) expressed as split matmul
    g = (jnp.dot(pooled_ref[...], lw0_text_ref[...],
                 preferred_element_type=jnp.float32)
         + jnp.dot(h, lw0_spec_ref[...], preferred_element_type=jnp.float32))
    g = bn_relu(g, row)
    row += 3
    for w_ref in last_wh_refs:
        g = jnp.dot(g, w_ref[...], preferred_element_type=jnp.float32)
        g = bn_relu(g, row)
        row += 3

    # --- final linear + log_softmax (mask padded class lanes) ----------------
    z = jnp.dot(g, fw_ref[...], preferred_element_type=jnp.float32)
    z = z + vec[row][None, :cp]
    col = lax.broadcasted_iota(jnp.int32, z.shape, 1)
    z = jnp.where(col < num_classes, z, -1e30)
    m = jnp.max(z, axis=-1, keepdims=True)
    lse = m + jnp.log(jnp.sum(jnp.exp(z - m), axis=-1, keepdims=True))
    o_ref[...] = (z - lse).astype(o_ref.dtype)


def fused_multiple_model(pooled_p, specs_p, operands, num_layers, num_classes,
                         class_pad):
    batch = pooled_p.shape[0]
    inputs = [pooled_p, specs_p] + list(operands)
    return pl.pallas_call(
        functools.partial(_fused_forward_kernel, num_layers, num_classes),
        out_shape=jax.ShapeDtypeStruct((batch, class_pad), jnp.float32),
        in_specs=[_full_spec(x.shape) for x in inputs],
        out_specs=_full_spec((batch, class_pad)),
    )(*inputs)


# ----------------------------------------------------------------------------
# Parameter construction (deterministic, synthetic) - mirrors torch defaults
# ----------------------------------------------------------------------------
def _make_linear(key, d_in, d_out):
    kw, kb = jax.random.split(key)
    bound = 1.0 / jnp.sqrt(jnp.float32(d_in))
    w = jax.random.uniform(kw, (d_in, d_out), jnp.float32, -bound, bound)
    b = jax.random.uniform(kb, (d_out,), jnp.float32, -bound, bound)
    return w, b


def make_mlp_params(key, input_dim, num_mlp_layers, emb_dim, num_classes,
                    multi_model):
    """Mirrors MLP.__init__: [Linear, BN, ReLU, Dropout(p=0)] * L (+ head)."""
    params = {"layers": [], "final": None}
    d_in = input_dim
    for _ in range(num_mlp_layers):
        key, sub = jax.random.split(key)
        w, b = _make_linear(sub, d_in, emb_dim)
        params["layers"].append(
            (w, b, jnp.ones((emb_dim,), jnp.float32),
             jnp.zeros((emb_dim,), jnp.float32)))
        d_in = emb_dim
    if not multi_model:
        key, sub = jax.random.split(key)
        params["final"] = _make_linear(sub, emb_dim, num_classes)
    return params


def pack_operands(params):
    """Pad every weight to 128-lane-dense shape and pack the small vectors."""
    jt_layers = params["jt_specs"]["layers"]
    last_layers = params["last_mlp"]["layers"]
    final_w, final_b = params["last_mlp"]["final"]

    text_dim = params["flaubert_emb"].shape[1]
    hidden = jt_layers[0][0].shape[1]
    num_classes = final_w.shape[1]

    hp = _round_up(hidden)
    tp = _round_up(text_dim)
    cp = _round_up(num_classes)
    vw = max(hp, cp)

    ops = []
    # jt_specs layer 0: (2, hidden) -> (2, HP)  (rows used as VPU FMA operands)
    ops.append(_pad_to(jt_layers[0][0], hp, 1))
    for (w, _, _, _) in jt_layers[1:]:
        ops.append(_pad_to(_pad_to(w, hp, 1), hp, 0))
    # last_mlp layer 0: split ((text+hidden), hidden) weight into text/spec halves.
    lw0 = last_layers[0][0]
    ops.append(_pad_to(_pad_to(lw0[:text_dim], hp, 1), tp, 0))
    ops.append(_pad_to(_pad_to(lw0[text_dim:], hp, 1), hp, 0))
    for (w, _, _, _) in last_layers[1:]:
        ops.append(_pad_to(_pad_to(w, hp, 1), hp, 0))
    # final head weight
    ops.append(_pad_to(_pad_to(final_w, cp, 1), hp, 0))
    # packed bias/gamma/beta rows (+ final bias), one small VMEM operand.
    rows = []
    for (_, b, g, beta) in list(jt_layers) + list(last_layers):
        rows += [_pad_to(b[None, :], vw, 1),
                 _pad_to(g[None, :], vw, 1),
                 _pad_to(beta[None, :], vw, 1)]
    rows.append(_pad_to(final_b[None, :], vw, 1))
    vec = jnp.concatenate(rows, axis=0)
    vec = _pad_to(vec, _round_up(vec.shape[0], 8), 0)
    ops.append(vec)
    return ops, tp, cp


# ----------------------------------------------------------------------------
# MultipleModel forward
# ----------------------------------------------------------------------------
def multiple_model_forward(params, input_ids, attention_mask=None,
                           token_type_ids=None, stime=None, media=None,
                           duration=None, labels=None):
    # TODO(synk): Flaubert text tower stubbed by deterministic embedding lookup.
    pooled = params["flaubert_emb"][input_ids[:, 0]]          # (B, text_dim)
    specs = jnp.stack((stime, duration), axis=1)              # (B, 2)

    operands, tp, cp = pack_operands(params)
    pooled_p = _pad_to(pooled, tp, 1)                         # lane-dense
    specs_p = _pad_to(specs, LANE, 1)

    num_layers = len(params["jt_specs"]["layers"])
    num_classes = params["last_mlp"]["final"][0].shape[1]

    out_pad = fused_multiple_model(pooled_p, specs_p, operands,
                                   num_layers, num_classes, cp)
    return out_pad[:, :num_classes]


# ----------------------------------------------------------------------------
# Pure-JAX reference (same semantics as torch module in train(), drop_ratio=0)
# ----------------------------------------------------------------------------
def _reference_forward(params, input_ids, stime, duration):
    def mlp(x, mp):
        for (w, b, g, beta) in mp["layers"]:
            h = x @ w + b
            mean = jnp.mean(h, axis=0, keepdims=True)
            var = jnp.mean((h - mean) ** 2, axis=0, keepdims=True)
            x = jnp.maximum((h - mean) / jnp.sqrt(var + _BN_EPS) * g + beta, 0.0)
        if mp["final"] is None:
            return x
        w, b = mp["final"]
        return jax.nn.log_softmax(x @ w + b, axis=-1)

    pooled = params["flaubert_emb"][input_ids[:, 0]]
    xs = mlp(jnp.stack((stime, duration), axis=1), params["jt_specs"])
    return mlp(jnp.concatenate((pooled, xs), axis=1), params["last_mlp"])


# ----------------------------------------------------------------------------
# Main
# ----------------------------------------------------------------------------
if __name__ == "__main__":
    B = 8            # batch (one sublane tile)
    S = 8            # token sequence length
    VOCAB = 100
    TEXT_DIM = 32    # stand-in for Flaubert's 768-dim pooled output
    HIDDEN = 32      # emb_dim / hidden
    NUM_LAYERS = 2   # num_mlp_layers
    NUM_CLASSES = 4

    root = jax.random.PRNGKey(0)
    k_emb, k_jt, k_last, k_ids, k_st, k_du = jax.random.split(root, 6)

    params = {
        "flaubert_emb": jax.random.normal(k_emb, (VOCAB, TEXT_DIM), jnp.float32) * 0.02,
        "jt_specs": make_mlp_params(k_jt, input_dim=2, num_mlp_layers=NUM_LAYERS,
                                    emb_dim=HIDDEN, num_classes=NUM_CLASSES,
                                    multi_model=True),
        "last_mlp": make_mlp_params(k_last, input_dim=TEXT_DIM + HIDDEN,
                                    num_mlp_layers=NUM_LAYERS, emb_dim=HIDDEN,
                                    num_classes=NUM_CLASSES, multi_model=False),
    }

    input_ids = jax.random.randint(k_ids, (B, S), 0, VOCAB, dtype=jnp.int32)
    attention_mask = jnp.ones((B, S), jnp.int32)
    token_type_ids = jnp.zeros((B, S), jnp.int32)
    stime = jax.random.uniform(k_st, (B,), jnp.float32)
    media = jnp.zeros((B,), jnp.float32)   # unused by the reference forward
    duration = jax.random.uniform(k_du, (B,), jnp.float32)

    fwd = jax.jit(multiple_model_forward)
    out = jax.block_until_ready(
        fwd(params, input_ids, attention_mask, token_type_ids,
            stime, media, duration))

    assert out.shape == (B, NUM_CLASSES)
    # log_softmax rows must exponentiate-sum to ~1.
    assert jnp.allclose(jnp.sum(jnp.exp(out), axis=-1), 1.0, atol=1e-4)
    # Numerically match the unfused pure-JAX reference.
    ref = _reference_forward(params, input_ids, stime, duration)
    assert jnp.allclose(out, ref, atol=1e-3, rtol=1e-3), \
        float(jnp.max(jnp.abs(out - ref)))
    print("KERNEL_OK")
</pallas_src>

<mosaic_0001>
module attributes {stable_mosaic.version = 11 : i64} {
  func.func @_fused_forward_kernel(%arg0: memref<8x128xf32, #tpu.memory_space<vmem>>, %arg1: memref<8x128xf32, #tpu.memory_space<vmem>>, %arg2: memref<2x128xf32, #tpu.memory_space<vmem>>, %arg3: memref<128x128xf32, #tpu.memory_space<vmem>>, %arg4: memref<128x128xf32, #tpu.memory_space<vmem>>, %arg5: memref<128x128xf32, #tpu.memory_space<vmem>>, %arg6: memref<128x128xf32, #tpu.memory_space<vmem>>, %arg7: memref<128x128xf32, #tpu.memory_space<vmem>>, %arg8: memref<16x128xf32, #tpu.memory_space<vmem>>, %arg9: memref<8x128xf32, #tpu.memory_space<vmem>>) attributes {dimension_semantics = [], scalar_prefetch = 0 : i64, scratch_operands = 0 : i64, tpu.core_type = #tpu.core_type<tc>} {
    %c0 = arith.constant 0 : index
    %c0_0 = arith.constant 0 : index
    %0 = vector.load %arg8[%c0, %c0_0] : memref<16x128xf32, #tpu.memory_space<vmem>>, vector<16x128xf32>
    %c0_1 = arith.constant 0 : index
    %c0_2 = arith.constant 0 : index
    %1 = vector.load %arg1[%c0_1, %c0_2] : memref<8x128xf32, #tpu.memory_space<vmem>>, vector<8x128xf32>
    %c0_3 = arith.constant 0 : index
    %c0_4 = arith.constant 0 : index
    %2 = vector.load %arg2[%c0_3, %c0_4] : memref<2x128xf32, #tpu.memory_space<vmem>>, vector<2x128xf32>
    %3 = vector.extract_strided_slice %1 {offsets = [0, 0], sizes = [8, 1], strides = [1, 1]} : vector<8x128xf32> to vector<8x1xf32>
    %4 = vector.extract_strided_slice %2 {offsets = [0, 0], sizes = [1, 128], strides = [1, 1]} : vector<2x128xf32> to vector<1x128xf32>
    %5 = vector.broadcast %3 : vector<8x1xf32> to vector<8x128xf32>
    %6 = vector.broadcast %4 : vector<1x128xf32> to vector<8x128xf32>
    %7 = arith.mulf %5, %6 : vector<8x128xf32>
    %8 = vector.extract_strided_slice %1 {offsets = [0, 1], sizes = [8, 1], strides = [1, 1]} : vector<8x128xf32> to vector<8x1xf32>
    %9 = vector.extract_strided_slice %2 {offsets = [1, 0], sizes = [1, 128], strides = [1, 1]} : vector<2x128xf32> to vector<1x128xf32>
    %10 = vector.broadcast %8 : vector<8x1xf32> to vector<8x128xf32>
    %11 = vector.broadcast %9 : vector<1x128xf32> to vector<8x128xf32>
    %12 = arith.mulf %10, %11 : vector<8x128xf32>
    %13 = arith.addf %7, %12 : vector<8x128xf32>
    %14 = vector.extract_strided_slice %0 {offsets = [0, 0], sizes = [1, 128], strides = [1, 1]} : vector<16x128xf32> to vector<1x128xf32>
    %15 = vector.shape_cast %14 : vector<1x128xf32> to vector<128xf32>
    %16 = vector.shape_cast %15 : vector<128xf32> to vector<1x128xf32>
    %17 = vector.extract_strided_slice %0 {offsets = [1, 0], sizes = [1, 128], strides = [1, 1]} : vector<16x128xf32> to vector<1x128xf32>
    %18 = vector.shape_cast %17 : vector<1x128xf32> to vector<128xf32>
    %19 = vector.shape_cast %18 : vector<128xf32> to vector<1x128xf32>
    %20 = vector.extract_strided_slice %0 {offsets = [2, 0], sizes = [1, 128], strides = [1, 1]} : vector<16x128xf32> to vector<1x128xf32>
    %21 = vector.shape_cast %20 : vector<1x128xf32> to vector<128xf32>
    %22 = vector.shape_cast %21 : vector<128xf32> to vector<1x128xf32>
    %23 = vector.broadcast %16 : vector<1x128xf32> to vector<8x128xf32>
    %24 = arith.addf %13, %23 : vector<8x128xf32>
    %cst = arith.constant dense<0.000000e+00> : vector<128xf32>
    %25 = vector.multi_reduction <add>, %24, %cst [0] : vector<8x128xf32> to vector<128xf32>
    %26 = vector.shape_cast %25 : vector<128xf32> to vector<1x128xf32>
    %cst_5 = arith.constant 8.000000e+00 : f32
    %27 = vector.broadcast %cst_5 : f32 to vector<1x128xf32>
    %28 = arith.divf %26, %27 : vector<1x128xf32>
    %29 = arith.mulf %24, %24 : vector<8x128xf32>
    %cst_6 = arith.constant dense<0.000000e+00> : vector<128xf32>
    %30 = vector.multi_reduction <add>, %29, %cst_6 [0] : vector<8x128xf32> to vector<128xf32>
    %31 = vector.shape_cast %30 : vector<128xf32> to vector<1x128xf32>
    %cst_7 = arith.constant 8.000000e+00 : f32
    %32 = vector.broadcast %cst_7 : f32 to vector<1x128xf32>
    %33 = arith.divf %31, %32 : vector<1x128xf32>
    %34 = arith.mulf %28, %28 : vector<1x128xf32>
    %35 = arith.subf %33, %34 : vector<1x128xf32>
    %cst_8 = arith.constant 9.99999974E-6 : f32
    %36 = vector.broadcast %cst_8 : f32 to vector<1x128xf32>
    %37 = arith.addf %35, %36 : vector<1x128xf32>
    %38 = math.rsqrt %37 : vector<1x128xf32>
    %39 = arith.mulf %19, %38 : vector<1x128xf32>
    %40 = arith.mulf %28, %39 : vector<1x128xf32>
    %41 = arith.subf %22, %40 : vector<1x128xf32>
    %42 = vector.broadcast %39 : vector<1x128xf32> to vector<8x128xf32>
    %43 = arith.mulf %24, %42 : vector<8x128xf32>
    %44 = vector.broadcast %41 : vector<1x128xf32> to vector<8x128xf32>
    %45 = arith.addf %43, %44 : vector<8x128xf32>
    %cst_9 = arith.constant 0.000000e+00 : f32
    %46 = vector.broadcast %cst_9 : f32 to vector<8x128xf32>
    %47 = arith.maximumf %45, %46 : vector<8x128xf32>
    %c0_10 = arith.constant 0 : index
    %c0_11 = arith.constant 0 : index
    %48 = vector.load %arg3[%c0_10, %c0_11] : memref<128x128xf32, #tpu.memory_space<vmem>>, vector<128x128xf32>
    %cst_12 = arith.constant dense<0.000000e+00> : vector<8x128xf32>
    %49 = tpu.matmul %47, %48, %cst_12 {dimension_numbers = #tpu.dot_dimension_numbers<[1], [0], [0], [1], [0, 0, 1, 1], [], []>} : vector<8x128xf32>, vector<128x128xf32>, vector<8x128xf32> -> vector<8x128xf32>
    %50 = vector.extract_strided_slice %0 {offsets = [3, 0], sizes = [1, 128], strides = [1, 1]} : vector<16x128xf32> to vector<1x128xf32>
    %51 = vector.shape_cast %50 : vector<1x128xf32> to vector<128xf32>
    %52 = vector.shape_cast %51 : vector<128xf32> to vector<1x128xf32>
    %53 = vector.extract_strided_slice %0 {offsets = [4, 0], sizes = [1, 128], strides = [1, 1]} : vector<16x128xf32> to vector<1x128xf32>
    %54 = vector.shape_cast %53 : vector<1x128xf32> to vector<128xf32>
    %55 = vector.shape_cast %54 : vector<128xf32> to vector<1x128xf32>
    %56 = vector.extract_strided_slice %0 {offsets = [5, 0], sizes = [1, 128], strides = [1, 1]} : vector<16x128xf32> to vector<1x128xf32>
    %57 = vector.shape_cast %56 : vector<1x128xf32> to vector<128xf32>
    %58 = vector.shape_cast %57 : vector<128xf32> to vector<1x128xf32>
    %59 = vector.broadcast %52 : vector<1x128xf32> to vector<8x128xf32>
    %60 = arith.addf %49, %59 : vector<8x128xf32>
    %cst_13 = arith.constant dense<0.000000e+00> : vector<128xf32>
    %61 = vector.multi_reduction <add>, %60, %cst_13 [0] : vector<8x128xf32> to vector<128xf32>
    %62 = vector.shape_cast %61 : vector<128xf32> to vector<1x128xf32>
    %cst_14 = arith.constant 8.000000e+00 : f32
    %63 = vector.broadcast %cst_14 : f32 to vector<1x128xf32>
    %64 = arith.divf %62, %63 : vector<1x128xf32>
    %65 = arith.mulf %60, %60 : vector<8x128xf32>
    %cst_15 = arith.constant dense<0.000000e+00> : vector<128xf32>
    %66 = vector.multi_reduction <add>, %65, %cst_15 [0] : vector<8x128xf32> to vector<128xf32>
    %67 = vector.shape_cast %66 : vector<128xf32> to vector<1x128xf32>
    %cst_16 = arith.constant 8.000000e+00 : f32
    %68 = vector.broadcast %cst_16 : f32 to vector<1x128xf32>
    %69 = arith.divf %67, %68 : vector<1x128xf32>
    %70 = arith.mulf %64, %64 : vector<1x128xf32>
    %71 = arith.subf %69, %70 : vector<1x128xf32>
    %cst_17 = arith.constant 9.99999974E-6 : f32
    %72 = vector.broadcast %cst_17 : f32 to vector<1x128xf32>
    %73 = arith.addf %71, %72 : vector<1x128xf32>
    %74 = math.rsqrt %73 : vector<1x128xf32>
    %75 = arith.mulf %55, %74 : vector<1x128xf32>
    %76 = arith.mulf %64, %75 : vector<1x128xf32>
    %77 = arith.subf %58, %76 : vector<1x128xf32>
    %78 = vector.broadcast %75 : vector<1x128xf32> to vector<8x128xf32>
    %79 = arith.mulf %60, %78 : vector<8x128xf32>
    %80 = vector.broadcast %77 : vector<1x128xf32> to vector<8x128xf32>
    %81 = arith.addf %79, %80 : vector<8x128xf32>
    %cst_18 = arith.constant 0.000000e+00 : f32
    %82 = vector.broadcast %cst_18 : f32 to vector<8x128xf32>
    %83 = arith.maximumf %81, %82 : vector<8x128xf32>
    %c0_19 = arith.constant 0 : index
    %c0_20 = arith.constant 0 : index
    %84 = vector.load %arg0[%c0_19, %c0_20] : memref<8x128xf32, #tpu.memory_space<vmem>>, vector<8x128xf32>
    %c0_21 = arith.constant 0 : index
    %c0_22 = arith.constant 0 : index
    %85 = vector.load %arg4[%c0_21, %c0_22] : memref<128x128xf32, #tpu.memory_space<vmem>>, vector<128x128xf32>
    %cst_23 = arith.constant dense<0.000000e+00> : vector<8x128xf32>
    %86 = tpu.matmul %84, %85, %cst_23 {dimension_numbers = #tpu.dot_dimension_numbers<[1], [0], [0], [1], [0, 0, 1, 1], [], []>} : vector<8x128xf32>, vector<128x128xf32>, vector<8x128xf32> -> vector<8x128xf32>
    %c0_24 = arith.constant 0 : index
    %c0_25 = arith.constant 0 : index
    %87 = vector.load %arg5[%c0_24, %c0_25] : memref<128x128xf32, #tpu.memory_space<vmem>>, vector<128x128xf32>
    %cst_26 = arith.constant dense<0.000000e+00> : vector<8x128xf32>
    %88 = tpu.matmul %83, %87, %cst_26 {dimension_numbers = #tpu.dot_dimension_numbers<[1], [0], [0], [1], [0, 0, 1, 1], [], []>} : vector<8x128xf32>, vector<128x128xf32>, vector<8x128xf32> -> vector<8x128xf32>
    %89 = arith.addf %86, %88 : vector<8x128xf32>
    %90 = vector.extract_strided_slice %0 {offsets = [6, 0], sizes = [1, 128], strides = [1, 1]} : vector<16x128xf32> to vector<1x128xf32>
    %91 = vector.shape_cast %90 : vector<1x128xf32> to vector<128xf32>
    %92 = vector.shape_cast %91 : vector<128xf32> to vector<1x128xf32>
    %93 = vector.extract_strided_slice %0 {offsets = [7, 0], sizes = [1, 128], strides = [1, 1]} : vector<16x128xf32> to vector<1x128xf32>
    %94 = vector.shape_cast %93 : vector<1x128xf32> to vector<128xf32>
    %95 = vector.shape_cast %94 : vector<128xf32> to vector<1x128xf32>
    %96 = vector.extract_strided_slice %0 {offsets = [8, 0], sizes = [1, 128], strides = [1, 1]} : vector<16x128xf32> to vector<1x128xf32>
    %97 = vector.shape_cast %96 : vector<1x128xf32> to vector<128xf32>
    %98 = vector.shape_cast %97 : vector<128xf32> to vector<1x128xf32>
    %99 = vector.broadcast %92 : vector<1x128xf32> to vector<8x128xf32>
    %100 = arith.addf %89, %99 : vector<8x128xf32>
    %cst_27 = arith.constant dense<0.000000e+00> : vector<128xf32>
    %101 = vector.multi_reduction <add>, %100, %cst_27 [0] : vector<8x128xf32> to vector<128xf32>
    %102 = vector.shape_cast %101 : vector<128xf32> to vector<1x128xf32>
    %cst_28 = arith.constant 8.000000e+00 : f32
    %103 = vector.broadcast %cst_28 : f32 to vector<1x128xf32>
    %104 = arith.divf %102, %103 : vector<1x128xf32>
    %105 = arith.mulf %100, %100 : vector<8x128xf32>
    %cst_29 = arith.constant dense<0.000000e+00> : vector<128xf32>
    %106 = vector.multi_reduction <add>, %105, %cst_29 [0] : vector<8x128xf32> to vector<128xf32>
    %107 = vector.shape_cast %106 : vector<128xf32> to vector<1x128xf32>
    %cst_30 = arith.constant 8.000000e+00 : f32
    %108 = vector.broadcast %cst_30 : f32 to vector<1x128xf32>
    %109 = arith.divf %107, %108 : vector<1x128xf32>
    %110 = arith.mulf %104, %104 : vector<1x128xf32>
    %111 = arith.subf %109, %110 : vector<1x128xf32>
    %cst_31 = arith.constant 9.99999974E-6 : f32
    %112 = vector.broadcast %cst_31 : f32 to vector<1x128xf32>
    %113 = arith.addf %111, %112 : vector<1x128xf32>
    %114 = math.rsqrt %113 : vector<1x128xf32>
    %115 = arith.mulf %95, %114 : vector<1x128xf32>
    %116 = arith.mulf %104, %115 : vector<1x128xf32>
    %117 = arith.subf %98, %116 : vector<1x128xf32>
    %118 = vector.broadcast %115 : vector<1x128xf32> to vector<8x128xf32>
    %119 = arith.mulf %100, %118 : vector<8x128xf32>
    %120 = vector.broadcast %117 : vector<1x128xf32> to vector<8x128xf32>
    %121 = arith.addf %119, %120 : vector<8x128xf32>
    %cst_32 = arith.constant 0.000000e+00 : f32
    %122 = vector.broadcast %cst_32 : f32 to vector<8x128xf32>
    %123 = arith.maximumf %121, %122 : vector<8x128xf32>
    %c0_33 = arith.constant 0 : index
    %c0_34 = arith.constant 0 : index
    %124 = vector.load %arg6[%c0_33, %c0_34] : memref<128x128xf32, #tpu.memory_space<vmem>>, vector<128x128xf32>
    %cst_35 = arith.constant dense<0.000000e+00> : vector<8x128xf32>
    %125 = tpu.matmul %123, %124, %cst_35 {dimension_numbers = #tpu.dot_dimension_numbers<[1], [0], [0], [1], [0, 0, 1, 1], [], []>} : vector<8x128xf32>, vector<128x128xf32>, vector<8x128xf32> -> vector<8x128xf32>
    %126 = vector.extract_strided_slice %0 {offsets = [9, 0], sizes = [1, 128], strides = [1, 1]} : vector<16x128xf32> to vector<1x128xf32>
    %127 = vector.shape_cast %126 : vector<1x128xf32> to vector<128xf32>
    %128 = vector.shape_cast %127 : vector<128xf32> to vector<1x128xf32>
    %129 = vector.extract_strided_slice %0 {offsets = [10, 0], sizes = [1, 128], strides = [1, 1]} : vector<16x128xf32> to vector<1x128xf32>
    %130 = vector.shape_cast %129 : vector<1x128xf32> to vector<128xf32>
    %131 = vector.shape_cast %130 : vector<128xf32> to vector<1x128xf32>
    %132 = vector.extract_strided_slice %0 {offsets = [11, 0], sizes = [1, 128], strides = [1, 1]} : vector<16x128xf32> to vector<1x128xf32>
    %133 = vector.shape_cast %132 : vector<1x128xf32> to vector<128xf32>
    %134 = vector.shape_cast %133 : vector<128xf32> to vector<1x128xf32>
    %135 = vector.broadcast %128 : vector<1x128xf32> to vector<8x128xf32>
    %136 = arith.addf %125, %135 : vector<8x128xf32>
    %cst_36 = arith.constant dense<0.000000e+00> : vector<128xf32>
    %137 = vector.multi_reduction <add>, %136, %cst_36 [0] : vector<8x128xf32> to vector<128xf32>
    %138 = vector.shape_cast %137 : vector<128xf32> to vector<1x128xf32>
    %cst_37 = arith.constant 8.000000e+00 : f32
    %139 = vector.broadcast %cst_37 : f32 to vector<1x128xf32>
    %140 = arith.divf %138, %139 : vector<1x128xf32>
    %141 = arith.mulf %136, %136 : vector<8x128xf32>
    %cst_38 = arith.constant dense<0.000000e+00> : vector<128xf32>
    %142 = vector.multi_reduction <add>, %141, %cst_38 [0] : vector<8x128xf32> to vector<128xf32>
    %143 = vector.shape_cast %142 : vector<128xf32> to vector<1x128xf32>
    %cst_39 = arith.constant 8.000000e+00 : f32
    %144 = vector.broadcast %cst_39 : f32 to vector<1x128xf32>
    %145 = arith.divf %143, %144 : vector<1x128xf32>
    %146 = arith.mulf %140, %140 : vector<1x128xf32>
    %147 = arith.subf %145, %146 : vector<1x128xf32>
    %cst_40 = arith.constant 9.99999974E-6 : f32
    %148 = vector.broadcast %cst_40 : f32 to vector<1x128xf32>
    %149 = arith.addf %147, %148 : vector<1x128xf32>
    %150 = math.rsqrt %149 : vector<1x128xf32>
    %151 = arith.mulf %131, %150 : vector<1x128xf32>
    %152 = arith.mulf %140, %151 : vector<1x128xf32>
    %153 = arith.subf %134, %152 : vector<1x128xf32>
    %154 = vector.broadcast %151 : vector<1x128xf32> to vector<8x128xf32>
    %155 = arith.mulf %136, %154 : vector<8x128xf32>
    %156 = vector.broadcast %153 : vector<1x128xf32> to vector<8x128xf32>
    %157 = arith.addf %155, %156 : vector<8x128xf32>
    %cst_41 = arith.constant 0.000000e+00 : f32
    %158 = vector.broadcast %cst_41 : f32 to vector<8x128xf32>
    %159 = arith.maximumf %157, %158 : vector<8x128xf32>
    %c0_42 = arith.constant 0 : index
    %c0_43 = arith.constant 0 : index
    %160 = vector.load %arg7[%c0_42, %c0_43] : memref<128x128xf32, #tpu.memory_space<vmem>>, vector<128x128xf32>
    %cst_44 = arith.constant dense<0.000000e+00> : vector<8x128xf32>
    %161 = tpu.matmul %159, %160, %cst_44 {dimension_numbers = #tpu.dot_dimension_numbers<[1], [0], [0], [1], [0, 0, 1, 1], [], []>} : vector<8x128xf32>, vector<128x128xf32>, vector<8x128xf32> -> vector<8x128xf32>
    %162 = vector.extract_strided_slice %0 {offsets = [12, 0], sizes = [1, 128], strides = [1, 1]} : vector<16x128xf32> to vector<1x128xf32>
    %163 = vector.shape_cast %162 : vector<1x128xf32> to vector<128xf32>
    %164 = vector.shape_cast %163 : vector<128xf32> to vector<1x128xf32>
    %165 = vector.broadcast %164 : vector<1x128xf32> to vector<8x128xf32>
    %166 = arith.addf %161, %165 : vector<8x128xf32>
    %167 = tpu.iota {dimensions = array<i32: 1>} : vector<8x128xi32>
    %c4_i32 = arith.constant 4 : i32
    %168 = vector.broadcast %c4_i32 : i32 to vector<8x128xi32>
    %169 = arith.cmpi slt, %167, %168 : vector<8x128xi32>
    %cst_45 = arith.constant -1.000000e+30 : f32
    %170 = vector.broadcast %cst_45 : f32 to vector<8x128xf32>
    %171 = arith.select %169, %166, %170 : vector<8x128xi1>, vector<8x128xf32>
    %cst_46 = arith.constant dense<0xFF800000> : vector<8xf32>
    %172 = vector.multi_reduction <maximumf>, %171, %cst_46 [1] : vector<8x128xf32> to vector<8xf32>
    %173 = vector.shape_cast %172 : vector<8xf32> to vector<8x1xf32>
    %174 = vector.broadcast %173 : vector<8x1xf32> to vector<8x128xf32>
    %175 = arith.subf %171, %174 : vector<8x128xf32>
    %176 = math.exp %175 : vector<8x128xf32>
    %cst_47 = arith.constant dense<0.000000e+00> : vector<8xf32>
    %177 = vector.multi_reduction <add>, %176, %cst_47 [1] : vector<8x128xf32> to vector<8xf32>
    %178 = vector.shape_cast %177 : vector<8xf32> to vector<8x1xf32>
    %179 = math.log %178 : vector<8x1xf32>
    %180 = arith.addf %173, %179 : vector<8x1xf32>
    %181 = vector.broadcast %180 : vector<8x1xf32> to vector<8x128xf32>
    %182 = arith.subf %171, %181 : vector<8x128xf32>
    %c0_48 = arith.constant 0 : index
    %c0_49 = arith.constant 0 : index
    %183 = vector.load %arg9[%c0_48, %c0_49] : memref<8x128xf32, #tpu.memory_space<vmem>>, vector<8x128xf32>
    tpu.vector_store %arg9[%c0_48, %c0_49], %182 {strides = array<i32>} : memref<8x128xf32, #tpu.memory_space<vmem>>, vector<8x128xf32>,
    return
  }
}

</mosaic_0001>

<llo_original>
// kernel: multiple_model_forward.1
$region0: #{multiple_model_forward.1}
  #allocation0 [shape = 'u32[]', space=smem, size = 0x4, offset = 0x4, fixed_abs, tag = 'smem constant byte address 0x4 - core index']
  #allocation1 [shape = 'u32[72,128]{1,0:T(1,128)}', space=vmem, size = 0x9000, scoped, tag = 'internal scratch']
  %s0 = inlined_call_operand.vmem [shape: f32[8,128], index: 0, kind: input, shape index: {}]
  %s1 = inlined_call_operand.vmem [shape: f32[8,128], index: 1, kind: input, shape index: {}]
  %s2 = inlined_call_operand.vmem [shape: f32[2,128], index: 2, kind: input, shape index: {}]
  %s3 = inlined_call_operand.vmem [shape: f32[128,128], index: 3, kind: input, shape index: {}]
  %s4 = inlined_call_operand.vmem [shape: f32[128,128], index: 4, kind: input, shape index: {}]
  %s5 = inlined_call_operand.vmem [shape: f32[128,128], index: 5, kind: input, shape index: {}]
  %s6 = inlined_call_operand.vmem [shape: f32[128,128], index: 6, kind: input, shape index: {}]
  %s7 = inlined_call_operand.vmem [shape: f32[128,128], index: 7, kind: input, shape index: {}]
  %s8 = inlined_call_operand.vmem [shape: f32[16,128], index: 8, kind: input, shape index: {}]
  %s9 = inlined_call_operand.vmem [shape: f32[8,128], index: 9, kind: output, shape index: {}]
  %s10 = sld [smem:[#allocation0]]
  $region46: #{multiple_model_forward.1} parent=0
    _
  %s12 = ssub.s32 1, %s10
  %s13 = scalar_select 0, %s12, %s10
  // Predicated region
  $region2: #{multiple_model_forward.1} parent=0 // pred_check
    _
  $region3: #{multiple_model_forward.1} parent=0 // pred_check_branch
    %15 = sbr.rel (0) target = $region5
  $region4: #{multiple_model_forward.1} parent=0 // pred_region
    _
  $region5: #{multiple_model_forward.1} parent=0 // pred_fallthru
    _
  // Predicated region
  $region6: #{multiple_model_forward.1} parent=0 // pred_check
    _
  $region7: #{multiple_model_forward.1} parent=0 // pred_check_branch
    %17 = sbr.rel (0) target = $region9
  $region8: #{multiple_model_forward.1} parent=0 // pred_region
    _
  $region9: #{multiple_model_forward.1} parent=0 // pred_fallthru
    _
  // Predicated region
  $region10: #{multiple_model_forward.1} parent=0 // pred_check
    _
  $region11: #{multiple_model_forward.1} parent=0 // pred_check_branch
    %19 = sbr.rel (0) target = $region13
  $region12: #{multiple_model_forward.1} parent=0 // pred_region
    _
  $region13: #{multiple_model_forward.1} parent=0 // pred_fallthru
    _
  // Predicated region
  $region14: #{multiple_model_forward.1} parent=0 // pred_check
    _
  $region15: #{multiple_model_forward.1} parent=0 // pred_check_branch
    %21 = sbr.rel (0) target = $region17
  $region16: #{multiple_model_forward.1} parent=0 // pred_region
    _
  $region17: #{multiple_model_forward.1} parent=0 // pred_fallthru
    _
  // Predicated region
  $region18: #{multiple_model_forward.1} parent=0 // pred_check
    _
  $region19: #{multiple_model_forward.1} parent=0 // pred_check_branch
    %23 = sbr.rel (0) target = $region21
  $region20: #{multiple_model_forward.1} parent=0 // pred_region
    _
  $region21: #{multiple_model_forward.1} parent=0 // pred_fallthru
    _
  // Predicated region
  $region22: #{multiple_model_forward.1} parent=0 // pred_check
    _
  $region23: #{multiple_model_forward.1} parent=0 // pred_check_branch
    %25 = sbr.rel (0) target = $region25
  $region24: #{multiple_model_forward.1} parent=0 // pred_region
    _
  $region25: #{multiple_model_forward.1} parent=0 // pred_fallthru
    _
  // Predicated region
  $region26: #{multiple_model_forward.1} parent=0 // pred_check
    _
  $region27: #{multiple_model_forward.1} parent=0 // pred_check_branch
    %27 = sbr.rel (0) target = $region29
  $region28: #{multiple_model_forward.1} parent=0 // pred_region
    _
  $region29: #{multiple_model_forward.1} parent=0 // pred_fallthru
    _
  // Predicated region
  $region30: #{multiple_model_forward.1} parent=0 // pred_check
    _
  $region31: #{multiple_model_forward.1} parent=0 // pred_check_branch
    %29 = sbr.rel (0) target = $region33
  $region32: #{multiple_model_forward.1} parent=0 // pred_region
    _
  $region33: #{multiple_model_forward.1} parent=0 // pred_fallthru
    _
  // Predicated region
  $region34: #{multiple_model_forward.1} parent=0 // pred_check
    _
  $region35: #{multiple_model_forward.1} parent=0 // pred_check_branch
    %31 = sbr.rel (0) target = $region37
  $region36: #{multiple_model_forward.1} parent=0 // pred_region
    _
  $region37: #{multiple_model_forward.1} parent=0 // pred_fallthru
    _
  %v32 = vld [vmem:[%s8] sm:$0xff]
  %v33 = vld [vmem:[%s8 + $0x8] sm:$0xff]
  %v34 = vld [vmem:[%s1] sm:$0xff]
  %v35 = vld [vmem:[%s2] sm:$0x3]
  %37 = vset.pattern.permute.xlu0 0
  %38 = vperm.xlu0 %37, %v34
  %v39 = vpop.permute.xlu0 %38
  %v41 = vperm.slane %v35, 0
  %v42 = vmul.f32 %v39, %v41
  %43 = vset.pattern.permute.xlu0 1
  %44 = vperm.xlu0 %43, %v34
  %v45 = vpop.permute.xlu0 %44
  %v47 = vperm.slane %v35, 1
  %v48 = vmul.f32 %v45, %v47
  %v49 = vadd.f32 %v42, %v48
  %v50 = vperm.slane %v32, 0
  %v51 = vadd.f32 %v49, %v50
  %v52 = vrot.slane %v51, 4
  %v53 = vadd.f32 %v51, %v52
  %v54 = vrot.slane %v53, 2
  %v55 = vadd.f32 %v53, %v54
  %v56 = vrot.slane %v55, 1
  %v57 = vadd.f32 %v55, %v56
  %v58 = vrcp.pop 8.0
  %v59 = vmul.f32 8.0, %v58
  %v60 = vsub.f32 1.0, %v59
  %v61 = vmul.f32 %v58, %v60
  %v62 = vadd.f32 %v58, %v61
  %vm63 = vweird.f32 %v58
  %v64 = vsel %vm63, %v58, %v62
  %v65 = vmul.f32 %v57, %v64
  %v66 = vmul.f32 %v51, %v51
  %v67 = vrot.slane %v66, 4
  %v68 = vadd.f32 %v66, %v67
  %v69 = vrot.slane %v68, 2
  %v70 = vadd.f32 %v68, %v69
  %v71 = vrot.slane %v70, 1
  %v72 = vadd.f32 %v70, %v71
  %v73 = vmul.f32 %v72, %v64
  %v74 = vmul.f32 %v65, %v65
  %v75 = vsub.f32 %v73, %v74
  %v76 = vadd.f32 %v75, 1e-05
  %v77 = vrsqrt.pop %v76
  %v78 = vmul.f32 %v77, %v76
  %v79 = vmul.f32 %v78, %v77
  %v80 = vmul.f32 0.5, %v79
  %v81 = vsub.f32 1.5, %v80
  %v82 = vmul.f32 %v77, %v81
  %vm83 = vweird.f32 %v76
  %vm84 = vweird.f32 %v77
  %vm85 = vmor %vm83, %vm84
  %v86 = vsel %vm85, %v77, %v82
  %v87 = vmul.f32 %v32, %v86
  %v88 = vmul.f32 %v65, %v87
  %v90 = vrot.slane %v88, 7
  %v92 = vsub.f32 %v32, %v90
  %v93 = vperm.slane %v87, 1
  %v94 = vmul.f32 %v51, %v93
  %v95 = vperm.slane %v92, 2
  %v96 = vadd.f32 %v94, %v95
  %v97 = vmax.f32 %v96, 0.0
  %v98 = vld [vmem:[%s3] sm:$0xff]
  %v99 = vld [vmem:[%s3 + $0x8] sm:$0xff]
  %v100 = vld [vmem:[%s3 + $0x10] sm:$0xff]
  %v101 = vld [vmem:[%s3 + $0x18] sm:$0xff]
  %v102 = vld [vmem:[%s3 + $0x20] sm:$0xff]
  %v103 = vld [vmem:[%s3 + $0x28] sm:$0xff]
  %v104 = vld [vmem:[%s3 + $0x30] sm:$0xff]
  %v105 = vld [vmem:[%s3 + $0x38] sm:$0xff]
  %v106 = vld [vmem:[%s3 + $0x40] sm:$0xff]
  %v107 = vld [vmem:[%s3 + $0x48] sm:$0xff]
  %v108 = vld [vmem:[%s3 + $0x50] sm:$0xff]
  %v109 = vld [vmem:[%s3 + $0x58] sm:$0xff]
  %v110 = vld [vmem:[%s3 + $0x60] sm:$0xff]
  %v111 = vld [vmem:[%s3 + $0x68] sm:$0xff]
  %v112 = vld [vmem:[%s3 + $0x70] sm:$0xff]
  %v113 = vld [vmem:[%s3 + $0x78] sm:$0xff]
  %v114 = vperm.slane %v32, 3
  %115 = vmatpush.msra.mxu0 %v113
  %116 = vmatpush.msra.mxu0 %v112
  %117 = vmatpush.msra.mxu0 %v111
  %118 = vmatpush.msra.mxu0 %v110
  %119 = vmatpush.msra.mxu0 %v109
  %120 = vmatpush.msra.mxu0 %v108
  %121 = vmatpush.msra.mxu0 %v107
  %122 = vmatpush.msra.mxu0 %v106
  %123 = vmatpush.msra.mxu0 %v105
  %124 = vmatpush.msra.mxu0 %v104
  %125 = vmatpush.msra.mxu0 %v103
  %126 = vmatpush.msra.mxu0 %v102
  %127 = vmatpush.msra.mxu0 %v101
  %128 = vmatpush.msra.mxu0 %v100
  %129 = vmatpush.msra.mxu0 %v99
  %130 = vmatpush.msra.mxu0 %v98
  %131 = vmatmul.f32.gmra.mxu0 %v97
  %v132 = vpop.f32.mrf.mxu0
  %v133 = vadd.f32 %v114, %v132
  %134 = vdwg.mxu0
  %v135 = vrot.slane %v133, 4
  %v136 = vadd.f32 %v133, %v135
  %v137 = vrot.slane %v136, 2
  %v138 = vadd.f32 %v136, %v137
  %v139 = vrot.slane %v138, 1
  %v140 = vadd.f32 %v138, %v139
  %v141 = vmul.f32 %v140, %v64
  %v142 = vmul.f32 %v133, %v133
  %v143 = vrot.slane %v142, 4
  %v144 = vadd.f32 %v142, %v143
  %v145 = vrot.slane %v144, 2
  %v146 = vadd.f32 %v144, %v145
  %v147 = vrot.slane %v146, 1
  %v148 = vadd.f32 %v146, %v147
  %v149 = vmul.f32 %v148, %v64
  %v150 = vmul.f32 %v141, %v141
  %v151 = vsub.f32 %v149, %v150
  %v152 = vadd.f32 %v151, 1e-05
  %v153 = vrsqrt.pop %v152
  %v154 = vmul.f32 %v153, %v152
  %v155 = vmul.f32 %v154, %v153
  %v156 = vmul.f32 0.5, %v155
  %v157 = vsub.f32 1.5, %v156
  %v158 = vmul.f32 %v153, %v157
  %vm159 = vweird.f32 %v152
  %vm160 = vweird.f32 %v153
  %vm161 = vmor %vm159, %vm160
  %v162 = vsel %vm161, %v153, %v158
  %v163 = vmul.f32 %v32, %v162
  %v164 = vmul.f32 %v141, %v163
  %v166 = vrot.slane %v164, 7
  %v168 = vsub.f32 %v32, %v166
  %v169 = vperm.slane %v163, 4
  %v170 = vmul.f32 %v133, %v169
  %v171 = vperm.slane %v168, 5
  %v172 = vadd.f32 %v170, %v171
  %v173 = vmax.f32 %v172, 0.0
  %v174 = vld [vmem:[%s0] sm:$0xff]
  %v175 = vld [vmem:[%s4] sm:$0xff]
  %v176 = vld [vmem:[%s4 + $0x8] sm:$0xff]
  %v177 = vld [vmem:[%s4 + $0x10] sm:$0xff]
  %v178 = vld [vmem:[%s4 + $0x18] sm:$0xff]
  %v179 = vld [vmem:[%s4 + $0x20] sm:$0xff]
  %v180 = vld [vmem:[%s4 + $0x28] sm:$0xff]
  %v181 = vld [vmem:[%s4 + $0x30] sm:$0xff]
  %v182 = vld [vmem:[%s4 + $0x38] sm:$0xff]
  %v183 = vld [vmem:[%s4 + $0x40] sm:$0xff]
  %v184 = vld [vmem:[%s4 + $0x48] sm:$0xff]
  %v185 = vld [vmem:[%s4 + $0x50] sm:$0xff]
  %v186 = vld [vmem:[%s4 + $0x58] sm:$0xff]
  %v187 = vld [vmem:[%s4 + $0x60] sm:$0xff]
  %v188 = vld [vmem:[%s4 + $0x68] sm:$0xff]
  %v189 = vld [vmem:[%s4 + $0x70] sm:$0xff]
  %v190 = vld [vmem:[%s4 + $0x78] sm:$0xff]
  %v191 = vld [vmem:[%s5] sm:$0xff]
  %v192 = vld [vmem:[%s5 + $0x8] sm:$0xff]
  %v193 = vld [vmem:[%s5 + $0x10] sm:$0xff]
  %v194 = vld [vmem:[%s5 + $0x18] sm:$0xff]
  %v195 = vld [vmem:[%s5 + $0x20] sm:$0xff]
  %v196 = vld [vmem:[%s5 + $0x28] sm:$0xff]
  %v197 = vld [vmem:[%s5 + $0x30] sm:$0xff]
  %v198 = vld [vmem:[%s5 + $0x38] sm:$0xff]
  %v199 = vld [vmem:[%s5 + $0x40] sm:$0xff]
  %v200 = vld [vmem:[%s5 + $0x48] sm:$0xff]
  %v201 = vld [vmem:[%s5 + $0x50] sm:$0xff]
  %v202 = vld [vmem:[%s5 + $0x58] sm:$0xff]
  %v203 = vld [vmem:[%s5 + $0x60] sm:$0xff]
  %v204 = vld [vmem:[%s5 + $0x68] sm:$0xff]
  %v205 = vld [vmem:[%s5 + $0x70] sm:$0xff]
  %v206 = vld [vmem:[%s5 + $0x78] sm:$0xff]
  %207 = vmatpush.msra.mxu0 %v206
  %208 = vmatpush.msra.mxu0 %v205
  %209 = vmatpush.msra.mxu0 %v204
  %210 = vmatpush.msra.mxu0 %v203
  %211 = vmatpush.msra.mxu0 %v202
  %212 = vmatpush.msra.mxu0 %v201
  %213 = vmatpush.msra.mxu0 %v200
  %214 = vmatpush.msra.mxu0 %v199
  %215 = vmatpush.msra.mxu0 %v198
  %216 = vmatpush.msra.mxu0 %v197
  %217 = vmatpush.msra.mxu0 %v196
  %218 = vmatpush.msra.mxu0 %v195
  %219 = vmatpush.msra.mxu0 %v194
  %220 = vmatpush.msra.mxu0 %v193
  %221 = vmatpush.msra.mxu0 %v192
  %222 = vmatpush.msra.mxu0 %v191
  %223 = vmatmul.f32.gmra.mxu0 %v173
  %v224 = vpop.f32.mrf.mxu0
  %v225 = vadd.f32 0.0, %v224
  %226 = vdwg.mxu0
  %227 = vmatpush.msra.mxu0 %v190
  %228 = vmatpush.msra.mxu0 %v189
  %229 = vmatpush.msra.mxu0 %v188
  %230 = vmatpush.msra.mxu0 %v187
  %231 = vmatpush.msra.mxu0 %v186
  %232 = vmatpush.msra.mxu0 %v185
  %233 = vmatpush.msra.mxu0 %v184
  %234 = vmatpush.msra.mxu0 %v183
  %235 = vmatpush.msra.mxu0 %v182
  %236 = vmatpush.msra.mxu0 %v181
  %237 = vmatpush.msra.mxu0 %v180
  %238 = vmatpush.msra.mxu0 %v179
  %239 = vmatpush.msra.mxu0 %v178
  %240 = vmatpush.msra.mxu0 %v177
  %241 = vmatpush.msra.mxu0 %v176
  %242 = vmatpush.msra.mxu0 %v175
  %243 = vmatmul.f32.gmra.mxu0 %v174
  %v244 = vpop.f32.mrf.mxu0
  %v245 = vadd.f32 %v225, %v244
  %246 = vdwg.mxu0
  %v247 = vperm.slane %v32, 6
  %v248 = vadd.f32 %v245, %v247
  %v249 = vrot.slane %v248, 4
  %v250 = vadd.f32 %v248, %v249
  %v251 = vrot.slane %v250, 2
  %v252 = vadd.f32 %v250, %v251
  %v253 = vrot.slane %v252, 1
  %v254 = vadd.f32 %v252, %v253
  %v255 = vmul.f32 %v254, %v64
  %v256 = vmul.f32 %v248, %v248
  %v257 = vrot.slane %v256, 4
  %v258 = vadd.f32 %v256, %v257
  %v259 = vrot.slane %v258, 2
  %v260 = vadd.f32 %v258, %v259
  %v261 = vrot.slane %v260, 1
  %v262 = vadd.f32 %v260, %v261
  %v263 = vmul.f32 %v262, %v64
  %v264 = vmul.f32 %v255, %v255
  %v265 = vsub.f32 %v263, %v264
  %v266 = vadd.f32 %v265, 1e-05
  %v267 = vrsqrt.pop %v266
  %v268 = vmul.f32 %v267, %v266
  %v269 = vmul.f32 %v268, %v267
  %v270 = vmul.f32 0.5, %v269
  %v271 = vsub.f32 1.5, %v270
  %v272 = vmul.f32 %v267, %v271
  %vm273 = vweird.f32 %v266
  %vm274 = vweird.f32 %v267
  %vm275 = vmor %vm273, %vm274
  %v276 = vsel %vm275, %v267, %v272
  %v277 = vmul.f32 %v32, %v276
  %v278 = vmul.f32 %v255, %v277
  %v280 = vrot.slane %v278, 7
  %v282 = vsub.f32 %v33, %v280
  %v283 = vperm.slane %v277, 7
  %v284 = vmul.f32 %v248, %v283
  %v285 = vperm.slane %v282, 0
  %v286 = vadd.f32 %v284, %v285
  %v287 = vmax.f32 %v286, 0.0
  %v288 = vld [vmem:[%s6] sm:$0xff]
  %v289 = vld [vmem:[%s6 + $0x8] sm:$0xff]
  %v290 = vld [vmem:[%s6 + $0x10] sm:$0xff]
  %v291 = vld [vmem:[%s6 + $0x18] sm:$0xff]
  %v292 = vld [vmem:[%s6 + $0x20] sm:$0xff]
  %v293 = vld [vmem:[%s6 + $0x28] sm:$0xff]
  %v294 = vld [vmem:[%s6 + $0x30] sm:$0xff]
  %v295 = vld [vmem:[%s6 + $0x38] sm:$0xff]
  %v296 = vld [vmem:[%s6 + $0x40] sm:$0xff]
  %v297 = vld [vmem:[%s6 + $0x48] sm:$0xff]
  %v298 = vld [vmem:[%s6 + $0x50] sm:$0xff]
  %v299 = vld [vmem:[%s6 + $0x58] sm:$0xff]
  %v300 = vld [vmem:[%s6 + $0x60] sm:$0xff]
  %v301 = vld [vmem:[%s6 + $0x68] sm:$0xff]
  %v302 = vld [vmem:[%s6 + $0x70] sm:$0xff]
  %v303 = vld [vmem:[%s6 + $0x78] sm:$0xff]
  %v304 = vperm.slane %v33, 1
  %305 = vmatpush.msra.mxu0 %v303
  %306 = vmatpush.msra.mxu0 %v302
  %307 = vmatpush.msra.mxu0 %v301
  %308 = vmatpush.msra.mxu0 %v300
  %309 = vmatpush.msra.mxu0 %v299
  %310 = vmatpush.msra.mxu0 %v298
  %311 = vmatpush.msra.mxu0 %v297
  %312 = vmatpush.msra.mxu0 %v296
  %313 = vmatpush.msra.mxu0 %v295
  %314 = vmatpush.msra.mxu0 %v294
  %315 = vmatpush.msra.mxu0 %v293
  %316 = vmatpush.msra.mxu0 %v292
  %317 = vmatpush.msra.mxu0 %v291
  %318 = vmatpush.msra.mxu0 %v290
  %319 = vmatpush.msra.mxu0 %v289
  %320 = vmatpush.msra.mxu0 %v288
  %321 = vmatmul.f32.gmra.mxu0 %v287
  %v322 = vpop.f32.mrf.mxu0
  %v323 = vadd.f32 %v304, %v322
  %324 = vdwg.mxu0
  %v325 = vrot.slane %v323, 4
  %v326 = vadd.f32 %v323, %v325
  %v327 = vrot.slane %v326, 2
  %v328 = vadd.f32 %v326, %v327
  %v329 = vrot.slane %v328, 1
  %v330 = vadd.f32 %v328, %v329
  %v331 = vmul.f32 %v330, %v64
  %v332 = vmul.f32 %v323, %v323
  %v333 = vrot.slane %v332, 4
  %v334 = vadd.f32 %v332, %v333
  %v335 = vrot.slane %v334, 2
  %v336 = vadd.f32 %v334, %v335
  %v337 = vrot.slane %v336, 1
  %v338 = vadd.f32 %v336, %v337
  %v339 = vmul.f32 %v338, %v64
  %v340 = vmul.f32 %v331, %v331
  %v341 = vsub.f32 %v339, %v340
  %v342 = vadd.f32 %v341, 1e-05
  %v343 = vrsqrt.pop %v342
  %v344 = vmul.f32 %v343, %v342
  %v345 = vmul.f32 %v344, %v343
  %v346 = vmul.f32 0.5, %v345
  %v347 = vsub.f32 1.5, %v346
  %v348 = vmul.f32 %v343, %v347
  %vm349 = vweird.f32 %v342
  %vm350 = vweird.f32 %v343
  %vm351 = vmor %vm349, %vm350
  %v352 = vsel %vm351, %v343, %v348
  %v353 = vmul.f32 %v33, %v352
  %v354 = vmul.f32 %v331, %v353
  %v356 = vrot.slane %v354, 7
  %v358 = vsub.f32 %v33, %v356
  %v359 = vperm.slane %v353, 2
  %v360 = vmul.f32 %v323, %v359
  %v361 = vperm.slane %v358, 3
  %v362 = vadd.f32 %v360, %v361
  %v363 = vmax.f32 %v362, 0.0
  %v364 = vld [vmem:[%s7] sm:$0xff]
  %v365 = vld [vmem:[%s7 + $0x8] sm:$0xff]
  %v366 = vld [vmem:[%s7 + $0x10] sm:$0xff]
  %v367 = vld [vmem:[%s7 + $0x18] sm:$0xff]
  %v368 = vld [vmem:[%s7 + $0x20] sm:$0xff]
  %v369 = vld [vmem:[%s7 + $0x28] sm:$0xff]
  %v370 = vld [vmem:[%s7 + $0x30] sm:$0xff]
  %v371 = vld [vmem:[%s7 + $0x38] sm:$0xff]
  %v372 = vld [vmem:[%s7 + $0x40] sm:$0xff]
  %v373 = vld [vmem:[%s7 + $0x48] sm:$0xff]
  %v374 = vld [vmem:[%s7 + $0x50] sm:$0xff]
  %v375 = vld [vmem:[%s7 + $0x58] sm:$0xff]
  %v376 = vld [vmem:[%s7 + $0x60] sm:$0xff]
  %v377 = vld [vmem:[%s7 + $0x68] sm:$0xff]
  %v378 = vld [vmem:[%s7 + $0x70] sm:$0xff]
  %v379 = vld [vmem:[%s7 + $0x78] sm:$0xff]
  %v380 = vperm.slane %v33, 4
  %381 = vmatpush.msra.mxu0 %v379
  %382 = vmatpush.msra.mxu0 %v378
  %383 = vmatpush.msra.mxu0 %v377
  %384 = vmatpush.msra.mxu0 %v376
  %385 = vmatpush.msra.mxu0 %v375
  %386 = vmatpush.msra.mxu0 %v374
  %387 = vmatpush.msra.mxu0 %v373
  %388 = vmatpush.msra.mxu0 %v372
  %389 = vmatpush.msra.mxu0 %v371
  %390 = vmatpush.msra.mxu0 %v370
  %391 = vmatpush.msra.mxu0 %v369
  %392 = vmatpush.msra.mxu0 %v368
  %393 = vmatpush.msra.mxu0 %v367
  %394 = vmatpush.msra.mxu0 %v366
  %395 = vmatpush.msra.mxu0 %v365
  %396 = vmatpush.msra.mxu0 %v364
  %397 = vmatmul.f32.gmra.mxu0 %v363
  %v398 = vpop.f32.mrf.mxu0
  %v399 = vadd.f32 %v380, %v398
  %400 = vdwg.mxu0
  %v401 = vlaneseq
  %v402 = vand.u32 %v401, 127
  %vm403 = vcmp.lt.s32.totalorder %v402, 4
  %v404 = vsel %vm403, %v399, -1e+30
  %405 = vmax.xlane.f32.xlu0 %v404
  %v406 = vpop.xlane.xlu0 %405
  %v407 = vsub.f32 %v404, %v406
  %v408 = vmul.f32 %v407, 1.442695
  %v409 = vpow.pop %v408
  %410 = vadd.xlane.f32.xlu0 %v409
  %v411 = vpop.xlane.xlu0 %410
  %v412 = vlog2.pop %v411
  %v413 = vmul.f32 %v412, 0.6931472
  %v414 = vadd.f32 %v406, %v413
  %v415 = vsub.f32 %v404, %v414
  %416 = vst [vmem:[%s9] sm:$0xff] %v415
  // Predicated region
  $region38: #{multiple_model_forward.1} parent=0 // pred_check
    _
  $region39: #{multiple_model_forward.1} parent=0 // pred_check_branch
    %418 = sbr.rel (0) target = $region41
  $region40: #{multiple_model_forward.1} parent=0 // pred_region
    _
  $region41: #{multiple_model_forward.1} parent=0 // pred_fallthru
    _
  // Predicated region
  $region42: #{multiple_model_forward.1} parent=0 // pred_check
    _
  $region43: #{multiple_model_forward.1} parent=0 // pred_check_branch
    %420 = sbr.rel (0) target = $region45
  $region44: #{multiple_model_forward.1} parent=0 // pred_region
    _
  $region45: #{multiple_model_forward.1} parent=0 // pred_fallthru
    _

</llo_original>
